<compile_context>
chip_gen: v7x
topology: tpu7x:2x2x1
jax: 0.10.0
libtpu: 0.0.40
codegen_flags: <defaults>
</compile_context>

<pallas_src>
import functools
from typing import NamedTuple

import jax
import jax.numpy as jnp
from jax.experimental import pallas as pl
from jax.experimental.pallas import tpu as pltpu


def _round_up(x, m):
    return (x + m - 1) // m * m


class _PackMeta(NamedTuple):
    D: int          # feature width of y (layer-0 contraction)
    Wh: int         # round_up(H, 128)   : layer-0 out / layer-1 contraction
    Wh2: int        # round_up(H2, 128)  : layer-1 out / layer-2 contraction
    Wo: int         # round_up(input_dim, 128): padded output width
    off_b0: int
    off_w1: int
    off_b1: int
    off_w2: int
    off_b2: int
    rows: int
    out_dim: int    # true net output width (<= input_dim)
    negated: bool   # True if w2/b2 were pre-negated (backwards folded in)


def pack_params(params, input_dim, dtype=jnp.bfloat16, negate=False):
    """One-time packing of the 3-layer gradient MLP into one lane-dense blob.

    Every unused entry is exactly zero, so padded math is exact: tanh(0)=0
    keeps padded hidden channels zero and padded output columns are the zeros
    the PyTorch module would concatenate (fused output padding).  The layer-0
    weight section is allocated round_up(D,128) rows so a lane-padded state
    (Euler solver) can contract against zero rows with no extra slicing.
    """
    w0, b0, w1, b1, w2, b2 = params
    D, H = w0.shape
    H2 = w1.shape[1]
    out_dim = w2.shape[1]
    assert w1.shape[0] == H and w2.shape[0] == H2
    assert out_dim <= input_dim, "module contract: net output width <= input_dim"

    Wh = _round_up(H, 128)
    Wh2 = _round_up(H2, 128)
    Wo = _round_up(input_dim, 128)
    Wb = max(Wh, Wh2, Wo)             # blob lane width (rectangular container)

    R0 = _round_up(D, 128)            # layer-0 rows (lane-padded, zeros beyond D)
    off_b0 = R0
    off_w1 = off_b0 + 8
    off_b1 = off_w1 + Wh
    off_w2 = off_b1 + 8
    off_b2 = off_w2 + Wh2
    rows = off_b2 + 8

    sgn = -1.0 if negate else 1.0
    blob = jnp.zeros((rows, Wb), dtype)
    blob = blob.at[0:D, 0:H].set(w0.astype(dtype))
    blob = blob.at[off_b0, 0:H].set(jnp.reshape(b0, (-1,)).astype(dtype))
    blob = blob.at[off_w1:off_w1 + H, 0:H2].set(w1.astype(dtype))
    blob = blob.at[off_b1, 0:H2].set(jnp.reshape(b1, (-1,)).astype(dtype))
    blob = blob.at[off_w2:off_w2 + H2, 0:out_dim].set((sgn * w2).astype(dtype))
    blob = blob.at[off_b2, 0:out_dim].set(
        (sgn * jnp.reshape(b2, (-1,))).astype(dtype))

    meta = _PackMeta(D=D, Wh=Wh, Wh2=Wh2, Wo=Wo, off_b0=off_b0, off_w1=off_w1,
                     off_b1=off_b1, off_w2=off_w2, off_b2=off_b2, rows=rows,
                     out_dim=out_dim, negated=bool(negate))
    return blob, meta


def _batch_tile(B, block_batch):
    """8-aligned batch tile; aims for >=2 tiles so v7x's two TCs both work."""
    if B <= 8:
        return B                                   # single full-array tile
    tb = min(block_batch, _round_up(pl.cdiv(B, 2), 8))
    return max(8, min(tb, _round_up(B, 8)))


def _vmem_limit_bytes(needed):
    return int(min(max(needed + (8 << 20), 32 << 20), 100 << 20))


def _mlp_body(y, p_ref, m: _PackMeta, out_w=None):
    """Linear->Tanh->Linear->Tanh->Linear, per-layer lane widths.

    y: (rows, Dc) with Dc == m.D (forward) or Dc == round_up(m.D,128) with
    zero padding (lane-padded Euler state).  LHS is cast to the blob dtype so
    the MXU runs its native (bf16) path; accumulation stays f32.  Returns a
    (rows, out_w) f32 block whose columns >= m.out_dim are exactly zero.
    """
    out_w = m.Wo if out_w is None else out_w
    pdt = p_ref.dtype
    Dc = y.shape[-1]

    h = jnp.dot(y.astype(pdt), p_ref[0:Dc, 0:m.Wh],
                preferred_element_type=jnp.float32)
    h = jnp.tanh(h + p_ref[m.off_b0:m.off_b0 + 1, 0:m.Wh].astype(jnp.float32))

    h = jnp.dot(h.astype(pdt), p_ref[m.off_w1:m.off_w1 + m.Wh, 0:m.Wh2],
                preferred_element_type=jnp.float32)
    h = jnp.tanh(h + p_ref[m.off_b1:m.off_b1 + 1, 0:m.Wh2].astype(jnp.float32))

    g = jnp.dot(h.astype(pdt), p_ref[m.off_w2:m.off_w2 + m.Wh2, 0:out_w],
                preferred_element_type=jnp.float32)
    return g + p_ref[m.off_b2:m.off_b2 + 1, 0:out_w].astype(jnp.float32)


def _ode_forward_kernel(y_ref, p_ref, out_ref, *, meta, negate):
    g = _mlp_body(y_ref[...], p_ref, meta)
    if negate:                       # fallback only; normally folded at pack time
        g = -g
    out_ref[...] = g[:, :out_ref.shape[-1]].astype(out_ref.dtype)


def ode_func_forward(t_local, y, packed_params, *, input_dim, backwards=False,
                     block_batch=1024, lane_padded_output=False):
    """Mirrors ODEFunc.forward.  t_local is unused by the gradient net
    (matches PyTorch).  Output is (B, input_dim) with the zero padding fused
    into the kernel; pass lane_padded_output=True to get a lane-dense
    (B, round_up(input_dim,128)) slab instead (extra columns are zero)."""
    del t_local
    blob, meta = packed_params
    B, D = y.shape
    assert D == meta.D
    assert meta.out_dim <= input_dim <= meta.Wo

    negate = bool(backwards) != meta.negated
    out_w = meta.Wo if lane_padded_output else input_dim

    tb = _batch_tile(B, block_batch)
    grid = (pl.cdiv(B, tb),)

    vmem_limit = _vmem_limit_bytes(
        2 * blob.size * blob.dtype.itemsize
        + 2 * tb * D * y.dtype.itemsize
        + 2 * tb * out_w * y.dtype.itemsize
        + 4 * tb * max(meta.Wh, meta.Wh2, meta.Wo))   # f32 intermediates

    kernel = functools.partial(_ode_forward_kernel, meta=meta, negate=negate)
    return pl.pallas_call(
        kernel,
        out_shape=jax.ShapeDtypeStruct((B, out_w), y.dtype),
        grid=grid,
        in_specs=[
            pl.BlockSpec((tb, D), lambda i: (i, 0)),       # batch-tiled activations
            pl.BlockSpec(blob.shape, lambda i: (0, 0)),    # weights: VMEM-resident
        ],
        out_specs=pl.BlockSpec((tb, out_w), lambda i: (i, 0)),
        compiler_params=pltpu.CompilerParams(
            dimension_semantics=("parallel",),             # v7x: shard across TCs
            vmem_limit_bytes=vmem_limit),
    )(y, blob)


def _ode_euler_kernel(y0_ref, p_ref, y_out_ref, y_sc, *, meta, dt, negate,
                      steps_per_iter):
    step = pl.program_id(1)
    D = meta.D
    Wd = y_sc.shape[-1]                       # round_up(D, 128): lane-dense state

    @pl.when(step == 0)
    def _():
        y_sc[...] = jnp.zeros_like(y_sc)
        y_sc[:, :D] = y0_ref[...].astype(jnp.float32)

    y = y_sc[...]
    sgn_dt = -dt if negate else dt
    for _ in range(steps_per_iter):           # unrolled: amortizes grid-step cost
        g = _mlp_body(y, p_ref, meta, out_w=Wd)   # cols >= D are exactly zero
        y = y + sgn_dt * g                        # full-lane-width f32 update
    y_sc[...] = y

    @pl.when(step == pl.num_programs(1) - 1)
    def _():
        y_out_ref[...] = y[:, :D].astype(y_out_ref.dtype)


def ode_solve_euler_fused(y0, packed_params, *, dt, n_steps, backwards=False,
                          block_batch=1024, max_unroll=8):
    """Fixed-step explicit-Euler solve fused into ONE pallas_call.

    Weights are DMA'd once and stay VMEM-resident across the step axis
    ("arbitrary"); the state is carried lane-padded in an f32 VMEM scratch,
    and `k` solver steps are unrolled per grid iteration.  Assumes the net's
    output width equals y0.shape[1] (standard latent-ODE case)."""
    blob, meta = packed_params
    B, D = y0.shape
    assert D == meta.D
    assert meta.out_dim == D, "Euler path needs net output width == state width"

    negate = bool(backwards) != meta.negated

    k = 1                                      # largest divisor of n_steps <= max_unroll
    for cand in range(min(max_unroll, n_steps), 0, -1):
        if n_steps % cand == 0:
            k = cand
            break

    tb = _batch_tile(B, block_batch)
    Wd = _round_up(D, 128)
    grid = (pl.cdiv(B, tb), n_steps // k)

    vmem_limit = _vmem_limit_bytes(
        2 * blob.size * blob.dtype.itemsize
        + 4 * tb * D * y0.dtype.itemsize       # in + out, double-buffered
        + 4 * tb * Wd                          # f32 state scratch
        + 4 * tb * max(meta.Wh, meta.Wh2, Wd))

    kernel = functools.partial(_ode_euler_kernel, meta=meta, dt=float(dt),
                               negate=negate, steps_per_iter=k)
    return pl.pallas_call(
        kernel,
        out_shape=jax.ShapeDtypeStruct((B, D), y0.dtype),
        grid=grid,
        in_specs=[
            pl.BlockSpec((tb, D), lambda i, s: (i, 0)),
            pl.BlockSpec(blob.shape, lambda i, s: (0, 0)),  # weights resident
        ],
        out_specs=pl.BlockSpec((tb, D), lambda i, s: (i, 0)),
        scratch_shapes=[pltpu.VMEM((tb, Wd), jnp.float32)],
        compiler_params=pltpu.CompilerParams(
            dimension_semantics=("parallel", "arbitrary"),
            vmem_limit_bytes=vmem_limit),
    )(y0, blob)


def init_params(key, latent_dim, hidden_dim, dtype=jnp.float32):
    """Deterministic synthetic init for the 3-layer gradient MLP."""
    ks = jax.random.split(key, 6)

    def lin(kw, kb, fan_in, fan_out):
        bound = 1.0 / jnp.sqrt(fan_in)
        w = jax.random.uniform(kw, (fan_in, fan_out), dtype, -bound, bound)
        b = jax.random.uniform(kb, (1, fan_out), dtype, -bound, bound)
        return w, b

    w0, b0 = lin(ks[0], ks[1], latent_dim, hidden_dim)
    w1, b1 = lin(ks[2], ks[3], hidden_dim, hidden_dim)
    w2, b2 = lin(ks[4], ks[5], hidden_dim, latent_dim)
    return (w0, b0, w1, b1, w2, b2)


if __name__ == "__main__":
    key = jax.random.PRNGKey(0)
    k_y, k_y2, k_p = jax.random.split(key, 3)

    B = 16           # batch (two 8-row tiles -> exercises v7x dual-TC sharding)
    LATENT = 32      # latent_dim
    HIDDEN = 32      # ode net hidden units
    INPUT_DIM = 32   # == latent_dim (no padding needed on this path)

    y = jax.random.normal(k_y, (B, LATENT), jnp.float32)
    t_local = jnp.float32(0.5)   # unused by the gradient net (matches PyTorch)
    params = init_params(k_p, LATENT, HIDDEN)

    # Pure-JAX reference (same math path).
    w0, b0, w1, b1, w2, b2 = params

    def ref_net(x):
        h = jnp.tanh(x @ w0 + b0)
        h = jnp.tanh(h @ w1 + b1)
        return h @ w2 + b2

    ref = ref_net(y)

    # --- f32-packed path: bit-for-bit style checks -------------------------
    packed_f32 = pack_params(params, INPUT_DIM, dtype=jnp.float32)
    grad = ode_func_forward(t_local, y, packed_f32, input_dim=INPUT_DIM)
    jax.block_until_ready(grad)
    assert grad.shape == (B, INPUT_DIM)
    assert jnp.allclose(grad, ref, atol=1e-5, rtol=1e-5)

    # backwards=True, negation folded into the pack (fast path)
    packed_neg = pack_params(params, INPUT_DIM, dtype=jnp.float32, negate=True)
    grad_bwd = ode_func_forward(t_local, y, packed_neg, input_dim=INPUT_DIM,
                                backwards=True)
    jax.block_until_ready(grad_bwd)
    assert jnp.allclose(grad_bwd, -ref, atol=1e-5, rtol=1e-5)

    # backwards=True on a non-negated pack (runtime fallback negation)
    grad_bwd2 = ode_func_forward(t_local, y, packed_f32, input_dim=INPUT_DIM,
                                 backwards=True)
    jax.block_until_ready(grad_bwd2)
    assert jnp.allclose(grad_bwd2, -ref, atol=1e-5, rtol=1e-5)

    # fused output zero-padding path (input_dim > net output width)
    INPUT_DIM_WIDE = 48
    packed_wide = pack_params(params, INPUT_DIM_WIDE, dtype=jnp.float32)
    grad_wide = ode_func_forward(t_local, y, packed_wide,
                                 input_dim=INPUT_DIM_WIDE)
    jax.block_until_ready(grad_wide)
    assert grad_wide.shape == (B, INPUT_DIM_WIDE)
    assert jnp.allclose(grad_wide[:, :LATENT], ref, atol=1e-5, rtol=1e-5)
    assert jnp.allclose(grad_wide[:, LATENT:], 0.0)

    # lane-dense padded output (callers that can take round_up(input_dim,128))
    grad_pad = ode_func_forward(t_local, y, packed_f32, input_dim=INPUT_DIM,
                                lane_padded_output=True)
    jax.block_until_ready(grad_pad)
    assert grad_pad.shape[1] % 128 == 0
    assert jnp.allclose(grad_pad[:, :LATENT], ref, atol=1e-5, rtol=1e-5)
    assert jnp.allclose(grad_pad[:, LATENT:], 0.0)

    # ragged batch (B % tile != 0): edge block masked on writeback
    B_RAG = 12
    y_rag = jax.random.normal(k_y2, (B_RAG, LATENT), jnp.float32)
    grad_rag = ode_func_forward(t_local, y_rag, packed_f32,
                                input_dim=INPUT_DIM, block_batch=8)
    jax.block_until_ready(grad_rag)
    assert grad_rag.shape == (B_RAG, INPUT_DIM)
    assert jnp.allclose(grad_rag, ref_net(y_rag), atol=1e-5, rtol=1e-5)

    # fused multi-step Euler solve: one pallas_call, weights VMEM-resident,
    # 5 steps unrolled per grid iteration
    N_STEPS, DT = 10, 0.05
    y_fused = ode_solve_euler_fused(y, packed_f32, dt=DT, n_steps=N_STEPS)
    jax.block_until_ready(y_fused)
    y_loop = y
    for _ in range(N_STEPS):
        y_loop = y_loop + DT * ref_net(y_loop)
    assert jnp.allclose(y_fused, y_loop, atol=1e-4, rtol=1e-4)

    # --- bf16-packed path (default): native MXU bf16, looser tolerance -----
    packed_bf16 = pack_params(params, INPUT_DIM)            # dtype=bf16 default
    grad_bf16 = ode_func_forward(t_local, y, packed_bf16, input_dim=INPUT_DIM)
    jax.block_until_ready(grad_bf16)
    assert grad_bf16.dtype == y.dtype
    assert jnp.allclose(grad_bf16, ref, atol=5e-2, rtol=5e-2)

    print("KERNEL_OK")
</pallas_src>

<mosaic_0001>
module attributes {stable_mosaic.version = 11 : i64} {
  func.func @_ode_forward_kernel(%arg0: i32, %arg1: memref<8x32xf32, #tpu.memory_space<vmem>>, %arg2: memref<408x128xf32, #tpu.memory_space<vmem>>, %arg3: memref<8x32xf32, #tpu.memory_space<vmem>>) attributes {dimension_semantics = [#tpu.dimension_semantics<parallel>], iteration_bounds = array<i64: 2>, scalar_prefetch = 0 : i64, scratch_operands = 0 : i64, tpu.core_type = #tpu.core_type<tc>, window_params = [{transform_indices = @transform_0, window_bounds = array<i64: 8, 32>}, {pipeline_mode = #tpu.pipeline_mode<synchronous>, transform_indices = @transform_1, window_bounds = array<i64: 408, 128>}, {transform_indices = @transform_2, window_bounds = array<i64: 8, 32>}]} {
    %c0 = arith.constant 0 : index
    %c0_0 = arith.constant 0 : index
    %0 = vector.load %arg1[%c0, %c0_0] : memref<8x32xf32, #tpu.memory_space<vmem>>, vector<8x32xf32>
    %c0_1 = arith.constant 0 : index
    %c0_2 = arith.constant 0 : index
    %1 = vector.load %arg2[%c0_1, %c0_2] : memref<408x128xf32, #tpu.memory_space<vmem>>, vector<32x128xf32>
    %cst = arith.constant dense<0.000000e+00> : vector<8x128xf32>
    %2 = tpu.matmul %0, %1, %cst {dimension_numbers = #tpu.dot_dimension_numbers<[1], [0], [0], [1], [0, 0, 1, 1], [], []>} : vector<8x32xf32>, vector<32x128xf32>, vector<8x128xf32> -> vector<8x128xf32>
    %c128 = arith.constant 128 : index
    %c0_3 = arith.constant 0 : index
    %3 = vector.load %arg2[%c128, %c0_3] : memref<408x128xf32, #tpu.memory_space<vmem>>, vector<1x128xf32>
    %4 = vector.broadcast %3 : vector<1x128xf32> to vector<8x128xf32>
    %5 = arith.addf %2, %4 : vector<8x128xf32>
    %6 = math.tanh %5 : vector<8x128xf32>
    %c136 = arith.constant 136 : index
    %c0_4 = arith.constant 0 : index
    %7 = vector.load %arg2[%c136, %c0_4] : memref<408x128xf32, #tpu.memory_space<vmem>>, vector<128x128xf32>
    %cst_5 = arith.constant dense<0.000000e+00> : vector<8x128xf32>
    %8 = tpu.matmul %6, %7, %cst_5 {dimension_numbers = #tpu.dot_dimension_numbers<[1], [0], [0], [1], [0, 0, 1, 1], [], []>} : vector<8x128xf32>, vector<128x128xf32>, vector<8x128xf32> -> vector<8x128xf32>
    %c264 = arith.constant 264 : index
    %c0_6 = arith.constant 0 : index
    %9 = vector.load %arg2[%c264, %c0_6] : memref<408x128xf32, #tpu.memory_space<vmem>>, vector<1x128xf32>
    %10 = vector.broadcast %9 : vector<1x128xf32> to vector<8x128xf32>
    %11 = arith.addf %8, %10 : vector<8x128xf32>
    %12 = math.tanh %11 : vector<8x128xf32>
    %c272 = arith.constant 272 : index
    %c0_7 = arith.constant 0 : index
    %13 = vector.load %arg2[%c272, %c0_7] : memref<408x128xf32, #tpu.memory_space<vmem>>, vector<128x128xf32>
    %cst_8 = arith.constant dense<0.000000e+00> : vector<8x128xf32>
    %14 = tpu.matmul %12, %13, %cst_8 {dimension_numbers = #tpu.dot_dimension_numbers<[1], [0], [0], [1], [0, 0, 1, 1], [], []>} : vector<8x128xf32>, vector<128x128xf32>, vector<8x128xf32> -> vector<8x128xf32>
    %c400 = arith.constant 400 : index
    %c0_9 = arith.constant 0 : index
    %15 = vector.load %arg2[%c400, %c0_9] : memref<408x128xf32, #tpu.memory_space<vmem>>, vector<1x128xf32>
    %16 = vector.broadcast %15 : vector<1x128xf32> to vector<8x128xf32>
    %17 = arith.addf %14, %16 : vector<8x128xf32>
    %18 = vector.extract_strided_slice %17 {offsets = [0, 0], sizes = [8, 32], strides = [1, 1]} : vector<8x128xf32> to vector<8x32xf32>
    %c0_10 = arith.constant 0 : index
    %c0_11 = arith.constant 0 : index
    %19 = vector.load %arg3[%c0_10, %c0_11] : memref<8x32xf32, #tpu.memory_space<vmem>>, vector<8x32xf32>
    tpu.vector_store %arg3[%c0_10, %c0_11], %18 {strides = array<i32>} : memref<8x32xf32, #tpu.memory_space<vmem>>, vector<8x32xf32>,
    return
  }
  func.func @transform_0(%arg0: i32) -> (i32, i32) {
    %c0_i32 = arith.constant 0 : i32
    %c0_i32_0 = arith.constant 0 : i32
    return %arg0, %c0_i32 : i32, i32
  }
  func.func @transform_1(%arg0: i32) -> (i32, i32) {
    %c0_i32 = arith.constant 0 : i32
    %c0_i32_0 = arith.constant 0 : i32
    %c0_i32_1 = arith.constant 0 : i32
    return %c0_i32, %c0_i32_0 : i32, i32
  }
  func.func @transform_2(%arg0: i32) -> (i32, i32) {
    %c0_i32 = arith.constant 0 : i32
    %c0_i32_0 = arith.constant 0 : i32
    return %arg0, %c0_i32 : i32, i32
  }
}

</mosaic_0001>

<llo_original>
// kernel: tpu_custom_call.1
$region0: #{tpu_custom_call.1}
  #allocation0 [shape = 'u32[]', space=smem, size = 0x4, offset = 0x4, fixed_abs, tag = 'smem constant byte address 0x4 - core index']
  #allocation1 [shape = 'u32[144,128]{1,0:T(1,128)}', space=vmem, size = 0x12000, scoped, tag = 'internal scratch']
  %s0 = inlined_call_operand.hbm [shape: f32[16,32], index: 0, kind: input, shape index: {}]
  %s1 = inlined_call_operand.hbm [shape: f32[408,128], index: 1, kind: input, shape index: {}]
  %s2 = inlined_call_operand.hbm [shape: f32[16,32], index: 2, kind: output, shape index: {}]
  %s3 = sld [smem:[#allocation0]]
  $region49: #{tpu_custom_call.1} parent=0
    _
  %s5 = ssub.s32 1, %s3
  %s6 = scalar_select 0, %s5, %s3
  $region1: #{tpu_custom_call.1} parent=0
    #allocation2 [shape = 'u8[8192]{0}', space=vmem, size = 0x2000, scoped, tag = 'input window, operand 0']
    #allocation3 [shape = 's32[2]{0}', space=sflag, size = 0x8, scoped, tag = 'scoped memory for tpu_custom_call.1']
    #allocation4 [shape = 's32[2]{0}', space=sflag, size = 0x8, scoped, tag = 'scoped memory for tpu_custom_call.1']
    #allocation5 [shape = 'u8[208896]{0}', space=vmem, size = 0x33000, scoped, tag = 'input window, operand 1, single buffered']
    #allocation6 [shape = 's32[1]{0}', space=sflag, size = 0x4, scoped, tag = 'scoped memory for tpu_custom_call.1']
    #allocation7 [shape = 'u8[8192]{0}', space=vmem, size = 0x2000, scoped, tag = 'output window, operand 0']
    %7 = vsyncpa [#allocation3], 0
    %s8 = scalar_lea.sflag [#allocation3], 1
    %9 = vsyncpa %s8, 0
    %10 = vsyncpa [#allocation6], 0
    %11 = vsyncpa [#allocation4], 0
    %s12 = scalar_lea.sflag [#allocation4], 1
    %13 = vsyncpa %s12, 0
    loop: start=0, step=1, limit=4
    $region2: #{tpu_custom_call.1} parent=1 // loop_pre_header
      _
    $region3: #{tpu_custom_call.1} parent=1 // loop_header
      %s15 = sphi 0, %s19
      %p16 = scmp.ge.s32.totalorder %s15, 4
      %s25 = sphi 0, %s27
      %s28 = sphi 0, %s25
      %s29 = sphi 0, %s28
      %s45 = sphi 0, %s29
      %s49 = sphi 0, %s49
      %s51 = sphi 0, %s49
      %s52 = sphi 0, %s51
      %s66 = sphi 0, %s52
      %s72 = sphi 0, %s74
      %s75 = sphi 0, %s72
      %s76 = sphi 0, %s75
      %s92 = sphi 0, %s76
    $region4: #{tpu_custom_call.1} parent=1 // loop_header_branch
      %18 = sbr.rel (%p16) target = $region8
    $region5: #{tpu_custom_call.1} parent=1 // loop_body
      %s20 = ssub.s32 %s15, 1
      %s21 = ssub.s32 %s15, 2
      %s22 = sadd.s32 %s15, 1
      %s23 = ssub.s32 %s15, %s22
      %p24 = scmp.eq.s32.totalorder %s23, 0
      %s26 = sadd.s32 %s25, 1
      %s27 = scalar_select %p24, %s25, %s26
      %p30 = pneg %p24
      %p31 = scmp.eq.s32.totalorder %s15, 1
      %p32 = por %p30, %p31
      %p33 = scmp.ne.s32.totalorder %s25, %s28
      %p34 = scmp.eq.s32.totalorder %s15, 0
      %p35 = por %p33, %p34
      %p36 = scmp.ne.s32.totalorder %s25, %s28
      %p37 = scmp.eq.s32.totalorder %s20, 1
      %p38 = por %p36, %p37
      %p39 = scmp.ne.s32.totalorder %s28, %s29
      %p40 = scmp.eq.s32.totalorder %s20, 0
      %p41 = por %p39, %p40
      %p42 = scmp.ne.s32.totalorder %s28, %s29
      %p43 = scmp.eq.s32.totalorder %s21, 1
      %p44 = por %p42, %p43
      %p46 = scmp.ne.s32.totalorder %s29, %s45
      %p47 = scmp.eq.s32.totalorder %s21, 0
      %p48 = por %p46, %p47
      %s50 = sadd.s32 %s49, 1
      %p53 = scmp.eq.s32.totalorder %s15, 1
      %p54 = scmp.ne.s32.totalorder %s49, %s51
      %p55 = scmp.eq.s32.totalorder %s15, 0
      %p56 = por %p54, %p55
      %p57 = scmp.ne.s32.totalorder %s49, %s51
      %p58 = scmp.eq.s32.totalorder %s20, 1
      %p59 = por %p57, %p58
      %p60 = scmp.ne.s32.totalorder %s51, %s52
      %p61 = scmp.eq.s32.totalorder %s20, 0
      %p62 = por %p60, %p61
      %p63 = scmp.ne.s32.totalorder %s51, %s52
      %p64 = scmp.eq.s32.totalorder %s21, 1
      %p65 = por %p63, %p64
      %p67 = scmp.ne.s32.totalorder %s52, %s66
      %p68 = scmp.eq.s32.totalorder %s21, 0
      %p69 = por %p67, %p68
      %s70 = ssub.s32 %s15, %s22
      %p71 = scmp.eq.s32.totalorder %s70, 0
      %s73 = sadd.s32 %s72, 1
      %s74 = scalar_select %p71, %s72, %s73
      %p77 = pneg %p71
      %p78 = scmp.eq.s32.totalorder %s15, 1
      %p79 = por %p77, %p78
      %p80 = scmp.ne.s32.totalorder %s72, %s75
      %p81 = scmp.eq.s32.totalorder %s15, 0
      %p82 = por %p80, %p81
      %p83 = scmp.ne.s32.totalorder %s72, %s75
      %p84 = scmp.eq.s32.totalorder %s20, 1
      %p85 = por %p83, %p84
      %p86 = scmp.ne.s32.totalorder %s75, %s76
      %p87 = scmp.eq.s32.totalorder %s20, 0
      %p88 = por %p86, %p87
      %p89 = scmp.ne.s32.totalorder %s75, %s76
      %p90 = scmp.eq.s32.totalorder %s21, 1
      %p91 = por %p89, %p90
      %p93 = scmp.ne.s32.totalorder %s76, %s92
      %p94 = scmp.eq.s32.totalorder %s21, 0
      %p95 = por %p93, %p94
      %p96 = scmp.le.s32.totalorder 1, %s15
      %p97 = scmp.lt.s32.totalorder %s15, 3
      %p98 = pnand %p96, %p97
      %p99 = pneg %p98
      // Predicated region
      $region9: #{tpu_custom_call.1} parent=5 // pred_check
        _
      $region10: #{tpu_custom_call.1} parent=5 // pred_check_branch
        %101 = sbr.rel (%p98) target = $region12
      $region11: #{tpu_custom_call.1} parent=5 // pred_region
        %s102 = ssub.s32 %s15, 1
        // Predicated region
        $region13: #{tpu_custom_call.1} parent=11 // pred_check
          %p103 = pneg %p62
        $region14: #{tpu_custom_call.1} parent=11 // pred_check_branch
          %105 = sbr.rel (%p103) target = $region16
        $region15: #{tpu_custom_call.1} parent=11 // pred_region
          %s107 = ssub.s32 6528, 6528
          %108 = vsyncadd [#allocation6], %s107
          %s109 = sshll.u32 [#allocation5], 4
          %s110 = int_to_ptr.vmem [resolvable:$true] %s109
          %115 = dma.hbm_to_vmem [thread:$0]  %s1, 6528, %s110, [#allocation6], 128, 128, 8
        $region16: #{tpu_custom_call.1} parent=11 // pred_fallthru
          _
      $region12: #{tpu_custom_call.1} parent=5 // pred_fallthru
        _
      %p116 = scmp.lt.s32.totalorder %s15, 2
      // Predicated region
      $region17: #{tpu_custom_call.1} parent=5 // pred_check
        %p117 = pneg %p116
      $region18: #{tpu_custom_call.1} parent=5 // pred_check_branch
        %119 = sbr.rel (%p117) target = $region20
      $region19: #{tpu_custom_call.1} parent=5 // pred_region
        // Predicated region
        $region21: #{tpu_custom_call.1} parent=19 // pred_check
          %p120 = pneg %p35
        $region22: #{tpu_custom_call.1} parent=19 // pred_check_branch
          %122 = sbr.rel (%p120) target = $region24
        $region23: #{tpu_custom_call.1} parent=19 // pred_region
          %s123 = sand.u32 %s25, 1
          %s124 = scalar_lea.sflag [#allocation3], %s123
          %s125 = sand.u32 %s25, 1
          %s126 = smul.addr %s125, 8
          %s127 = scalar_lea.vmem [#allocation2], %s126
          %s129 = ssub.s32 128, 128
          %130 = vsyncadd %s124, %s129
          %s131 = smul.addr %s15, 128
          %s132 = scalar_lea.hbm %s0, %s131
          %s134 = sshll.u32 %s127, 4
          %s135 = int_to_ptr.vmem [resolvable:$true] %s134
          %137 = dma.hbm_to_vmem [thread:$0]  %s132, 128, %s135, %s124
        $region24: #{tpu_custom_call.1} parent=19 // pred_fallthru
          _
      $region20: #{tpu_custom_call.1} parent=5 // pred_fallthru
        _
      %p138 = scmp.le.s32.totalorder 1, %s15
      %p139 = scmp.lt.s32.totalorder %s15, 3
      %p140 = pnand %p138, %p139
      %p141 = pneg %p140
      // Predicated region
      $region25: #{tpu_custom_call.1} parent=5 // pred_check
        _
      $region26: #{tpu_custom_call.1} parent=5 // pred_check_branch
        %143 = sbr.rel (%p140) target = $region28
      $region27: #{tpu_custom_call.1} parent=5 // pred_region
        %s144 = ssub.s32 %s15, 1
        %s145 = sand.u32 %s28, 1
        %s146 = scalar_lea.sflag [#allocation3], %s145
        %s147 = sand.u32 %s28, 1
        %s148 = smul.addr %s147, 8
        %s149 = scalar_lea.vmem [#allocation2], %s148
        // Predicated region
        $region29: #{tpu_custom_call.1} parent=27 // pred_check
          %p150 = pneg %p41
        $region30: #{tpu_custom_call.1} parent=27 // pred_check_branch
          %152 = sbr.rel (%p150) target = $region32
        $region31: #{tpu_custom_call.1} parent=27 // pred_region
          %153 = dma.done %s146, 128
        $region32: #{tpu_custom_call.1} parent=27 // pred_fallthru
          _
        // Predicated region
        $region33: #{tpu_custom_call.1} parent=27 // pred_check
          %p154 = pneg %p62
        $region34: #{tpu_custom_call.1} parent=27 // pred_check_branch
          %156 = sbr.rel (%p154) target = $region36
        $region35: #{tpu_custom_call.1} parent=27 // pred_region
          %157 = dma.done [#allocation6], 6528
        $region36: #{tpu_custom_call.1} parent=27 // pred_fallthru
          _
        %s158 = sand.u32 %s28, 1
        %s159 = scalar_lea.sflag [#allocation3], %s158
        %s160 = sand.u32 %s28, 1
        %s161 = smul.addr %s160, 8
        %s162 = scalar_lea.vmem [#allocation2], %s161
        %p163 = pneg %p41
        %p164 = pneg %p38
        %p165 = pneg %p62
        %p166 = pneg %p59
        %p167 = pneg %p88
        %p168 = pneg %p85
        %s169 = sand.u32 %s75, 1
        %s170 = scalar_lea.sflag [#allocation4], %s169
        %s171 = sand.u32 %s75, 1
        %s172 = smul.addr %s171, 8
        %s173 = scalar_lea.vmem [#allocation7], %s172
        %v174 = vld [vmem:[%s149] sm:$0xff]
        %v175 = vld [vmem:[#allocation5] sm:$0xff]
        %v176 = vld [vmem:[#allocation5 + $0x8] sm:$0xff]
        %v177 = vld [vmem:[#allocation5 + $0x10] sm:$0xff]
        %v178 = vld [vmem:[#allocation5 + $0x18] sm:$0xff]
        %v179 = vld [vmem:[#allocation5 + $0x80] sm:$0x1]
        %v180 = vlaneseq
        %v181 = vshrl.u32 %v180, 7
        %v182 = vsub.s32 0, %v181
        %v183 = vrot.slane %v179, %v182
        %vm184 = vcmask 261120
        %v186 = vsel %vm184, %v174, 0
        %188 = vmatprep.subr.mxu0 0.0
        %189 = vmatpush1.msra.mxu0 %v175
        %190 = vmatprep.subr.mxu0 0.0
        %191 = vmatpush1.msra.mxu0 %v176
        %192 = vmatprep.subr.mxu0 0.0
        %193 = vmatpush1.msra.mxu0 %v177
        %194 = vmatprep.subr.mxu0 0.0
        %195 = vmatpush1.msra.mxu0 %v178
        %196 = vmatprep.subr.mxu0 0.0
        %197 = vmatpush1.msra.mxu0 0.0
        %198 = vmatprep.subr.mxu0 0.0
        %199 = vmatpush1.msra.mxu0 0.0
        %200 = vmatprep.subr.mxu0 0.0
        %201 = vmatpush1.msra.mxu0 0.0
        %202 = vmatprep.subr.mxu0 0.0
        %203 = vmatpush1.msra.mxu0 0.0
        %204 = vmatprep.subr.mxu0 0.0
        %205 = vmatpush1.msra.mxu0 0.0
        %206 = vmatprep.subr.mxu0 0.0
        %207 = vmatpush1.msra.mxu0 0.0
        %208 = vmatprep.subr.mxu0 0.0
        %209 = vmatpush1.msra.mxu0 0.0
        %210 = vmatprep.subr.mxu0 0.0
        %211 = vmatpush1.msra.mxu0 0.0
        %212 = vmatprep.subr.mxu0 0.0
        %213 = vmatpush1.msra.mxu0 0.0
        %214 = vmatprep.subr.mxu0 0.0
        %215 = vmatpush1.msra.mxu0 0.0
        %216 = vmatprep.subr.mxu0 0.0
        %217 = vmatpush1.msra.mxu0 0.0
        %218 = vmatprep.subr.mxu0 0.0
        %219 = vmatpush1.msra.mxu0 0.0
        %220 = vmatprep.subr.mxu0 0.0
        %221 = vmatpush1.msra.mxu0 0.0
        %222 = vmatprep.subr.mxu0 0.0
        %223 = vmatpush1.msra.mxu0 0.0
        %224 = vmatprep.subr.mxu0 0.0
        %225 = vmatpush1.msra.mxu0 0.0
        %226 = vmatprep.subr.mxu0 0.0
        %227 = vmatpush1.msra.mxu0 0.0
        %228 = vmatprep.subr.mxu0 0.0
        %229 = vmatpush1.msra.mxu0 0.0
        %230 = vmatprep.subr.mxu0 0.0
        %231 = vmatpush1.msra.mxu0 0.0
        %232 = vmatprep.subr.mxu0 0.0
        %233 = vmatpush1.msra.mxu0 0.0
        %234 = vmatprep.subr.mxu0 0.0
        %235 = vmatpush1.msra.mxu0 0.0
        %236 = vmatprep.subr.mxu0 0.0
        %237 = vmatpush1.msra.mxu0 0.0
        %238 = vmatprep.subr.mxu0 0.0
        %239 = vmatpush1.msra.mxu0 0.0
        %240 = vmatprep.subr.mxu0 0.0
        %241 = vmatpush1.msra.mxu0 0.0
        %242 = vmatprep.subr.mxu0 0.0
        %243 = vmatpush1.msra.mxu0 0.0
        %244 = vmatprep.subr.mxu0 0.0
        %245 = vmatpush1.msra.mxu0 0.0
        %246 = vmatprep.subr.mxu0 0.0
        %247 = vmatpush1.msra.mxu0 0.0
        %248 = vmatprep.subr.mxu0 0.0
        %249 = vmatpush1.msra.mxu0 0.0
        %250 = vmatprep.subr.mxu0 0.0
        %251 = vmatpush1.msra.mxu0 0.0
        %252 = vmatprep.mubr.f32.mxu0 0.0
        %253 = vmatmul.mubr.f32.gmra.mrb[0].mxu0 %v186
        %v254 = vpop.f32.mrb[0].mxu0
        %v255 = vadd.f32 %v183, %v254
        %v256 = vpop.f32.mrb[0].mxu0
        %257 = vdwg.mxu0
        %v258 = vtanh.pop %v255
        %v259 = vld [vmem:[#allocation5 + $0x88] sm:$0xff]
        %v260 = vld [vmem:[#allocation5 + $0x90] sm:$0xff]
        %v261 = vld [vmem:[#allocation5 + $0x98] sm:$0xff]
        %v262 = vld [vmem:[#allocation5 + $0xa0] sm:$0xff]
        %v263 = vld [vmem:[#allocation5 + $0xa8] sm:$0xff]
        %v264 = vld [vmem:[#allocation5 + $0xb0] sm:$0xff]
        %v265 = vld [vmem:[#allocation5 + $0xb8] sm:$0xff]
        %v266 = vld [vmem:[#allocation5 + $0xc0] sm:$0xff]
        %v267 = vld [vmem:[#allocation5 + $0xc8] sm:$0xff]
        %v268 = vld [vmem:[#allocation5 + $0xd0] sm:$0xff]
        %v269 = vld [vmem:[#allocation5 + $0xd8] sm:$0xff]
        %v270 = vld [vmem:[#allocation5 + $0xe0] sm:$0xff]
        %v271 = vld [vmem:[#allocation5 + $0xe8] sm:$0xff]
        %v272 = vld [vmem:[#allocation5 + $0xf0] sm:$0xff]
        %v273 = vld [vmem:[#allocation5 + $0xf8] sm:$0xff]
        %v274 = vld [vmem:[#allocation5 + $0x100] sm:$0xff]
        %v275 = vld [vmem:[#allocation5 + $0x108] sm:$0x1]
        %v276 = vlaneseq
        %v277 = vshrl.u32 %v276, 7
        %v278 = vsub.s32 0, %v277
        %v279 = vrot.slane %v275, %v278
        %280 = vmatprep.subr.mxu0 0.0
        %281 = vmatpush1.msra.mxu0 %v259
        %282 = vmatprep.subr.mxu0 0.0
        %283 = vmatpush1.msra.mxu0 %v260
        %284 = vmatprep.subr.mxu0 0.0
        %285 = vmatpush1.msra.mxu0 %v261
        %286 = vmatprep.subr.mxu0 0.0
        %287 = vmatpush1.msra.mxu0 %v262
        %288 = vmatprep.subr.mxu0 0.0
        %289 = vmatpush1.msra.mxu0 %v263
        %290 = vmatprep.subr.mxu0 0.0
        %291 = vmatpush1.msra.mxu0 %v264
        %292 = vmatprep.subr.mxu0 0.0
        %293 = vmatpush1.msra.mxu0 %v265
        %294 = vmatprep.subr.mxu0 0.0
        %295 = vmatpush1.msra.mxu0 %v266
        %296 = vmatprep.subr.mxu0 0.0
        %297 = vmatpush1.msra.mxu0 %v267
        %298 = vmatprep.subr.mxu0 0.0
        %299 = vmatpush1.msra.mxu0 %v268
        %300 = vmatprep.subr.mxu0 0.0
        %301 = vmatpush1.msra.mxu0 %v269
        %302 = vmatprep.subr.mxu0 0.0
        %303 = vmatpush1.msra.mxu0 %v270
        %304 = vmatprep.subr.mxu0 0.0
        %305 = vmatpush1.msra.mxu0 %v271
        %306 = vmatprep.subr.mxu0 0.0
        %307 = vmatpush1.msra.mxu0 %v272
        %308 = vmatprep.subr.mxu0 0.0
        %309 = vmatpush1.msra.mxu0 %v273
        %310 = vmatprep.subr.mxu0 0.0
        %311 = vmatpush1.msra.mxu0 %v274
        %312 = vmatprep.subr.mxu0 0.0
        %313 = vmatpush1.msra.mxu0 0.0
        %314 = vmatprep.subr.mxu0 0.0
        %315 = vmatpush1.msra.mxu0 0.0
        %316 = vmatprep.subr.mxu0 0.0
        %317 = vmatpush1.msra.mxu0 0.0
        %318 = vmatprep.subr.mxu0 0.0
        %319 = vmatpush1.msra.mxu0 0.0
        %320 = vmatprep.subr.mxu0 0.0
        %321 = vmatpush1.msra.mxu0 0.0
        %322 = vmatprep.subr.mxu0 0.0
        %323 = vmatpush1.msra.mxu0 0.0
        %324 = vmatprep.subr.mxu0 0.0
        %325 = vmatpush1.msra.mxu0 0.0
        %326 = vmatprep.subr.mxu0 0.0
        %327 = vmatpush1.msra.mxu0 0.0
        %328 = vmatprep.subr.mxu0 0.0
        %329 = vmatpush1.msra.mxu0 0.0
        %330 = vmatprep.subr.mxu0 0.0
        %331 = vmatpush1.msra.mxu0 0.0
        %332 = vmatprep.subr.mxu0 0.0
        %333 = vmatpush1.msra.mxu0 0.0
        %334 = vmatprep.subr.mxu0 0.0
        %335 = vmatpush1.msra.mxu0 0.0
        %336 = vmatprep.subr.mxu0 0.0
        %337 = vmatpush1.msra.mxu0 0.0
        %338 = vmatprep.subr.mxu0 0.0
        %339 = vmatpush1.msra.mxu0 0.0
        %340 = vmatprep.subr.mxu0 0.0
        %341 = vmatpush1.msra.mxu0 0.0
        %342 = vmatprep.subr.mxu0 0.0
        %343 = vmatpush1.msra.mxu0 0.0
        %344 = vmatprep.mubr.f32.mxu0 0.0
        %345 = vmatmul.mubr.f32.gmra.mrb[0].mxu0 %v258
        %v346 = vpop.f32.mrb[0].mxu0
        %v347 = vadd.f32 %v279, %v346
        %v348 = vpop.f32.mrb[0].mxu0
        %349 = vdwg.mxu0
        %v350 = vtanh.pop %v347
        %v351 = vld [vmem:[#allocation5 + $0x110] sm:$0xff]
        %v352 = vld [vmem:[#allocation5 + $0x118] sm:$0xff]
        %v353 = vld [vmem:[#allocation5 + $0x120] sm:$0xff]
        %v354 = vld [vmem:[#allocation5 + $0x128] sm:$0xff]
        %v355 = vld [vmem:[#allocation5 + $0x130] sm:$0xff]
        %v356 = vld [vmem:[#allocation5 + $0x138] sm:$0xff]
        %v357 = vld [vmem:[#allocation5 + $0x140] sm:$0xff]
        %v358 = vld [vmem:[#allocation5 + $0x148] sm:$0xff]
        %v359 = vld [vmem:[#allocation5 + $0x150] sm:$0xff]
        %v360 = vld [vmem:[#allocation5 + $0x158] sm:$0xff]
        %v361 = vld [vmem:[#allocation5 + $0x160] sm:$0xff]
        %v362 = vld [vmem:[#allocation5 + $0x168] sm:$0xff]
        %v363 = vld [vmem:[#allocation5 + $0x170] sm:$0xff]
        %v364 = vld [vmem:[#allocation5 + $0x178] sm:$0xff]
        %v365 = vld [vmem:[#allocation5 + $0x180] sm:$0xff]
        %v366 = vld [vmem:[#allocation5 + $0x188] sm:$0xff]
        %v367 = vld [vmem:[#allocation5 + $0x190] sm:$0x1]
        %v368 = vlaneseq
        %v369 = vshrl.u32 %v368, 7
        %v370 = vsub.s32 0, %v369
        %v371 = vrot.slane %v367, %v370
        %372 = vmatprep.subr.mxu0 0.0
        %373 = vmatpush1.msra.mxu0 %v351
        %374 = vmatprep.subr.mxu0 0.0
        %375 = vmatpush1.msra.mxu0 %v352
        %376 = vmatprep.subr.mxu0 0.0
        %377 = vmatpush1.msra.mxu0 %v353
        %378 = vmatprep.subr.mxu0 0.0
        %379 = vmatpush1.msra.mxu0 %v354
        %380 = vmatprep.subr.mxu0 0.0
        %381 = vmatpush1.msra.mxu0 %v355
        %382 = vmatprep.subr.mxu0 0.0
        %383 = vmatpush1.msra.mxu0 %v356
        %384 = vmatprep.subr.mxu0 0.0
        %385 = vmatpush1.msra.mxu0 %v357
        %386 = vmatprep.subr.mxu0 0.0
        %387 = vmatpush1.msra.mxu0 %v358
        %388 = vmatprep.subr.mxu0 0.0
        %389 = vmatpush1.msra.mxu0 %v359
        %390 = vmatprep.subr.mxu0 0.0
        %391 = vmatpush1.msra.mxu0 %v360
        %392 = vmatprep.subr.mxu0 0.0
        %393 = vmatpush1.msra.mxu0 %v361
        %394 = vmatprep.subr.mxu0 0.0
        %395 = vmatpush1.msra.mxu0 %v362
        %396 = vmatprep.subr.mxu0 0.0
        %397 = vmatpush1.msra.mxu0 %v363
        %398 = vmatprep.subr.mxu0 0.0
        %399 = vmatpush1.msra.mxu0 %v364
        %400 = vmatprep.subr.mxu0 0.0
        %401 = vmatpush1.msra.mxu0 %v365
        %402 = vmatprep.subr.mxu0 0.0
        %403 = vmatpush1.msra.mxu0 %v366
        %404 = vmatprep.subr.mxu0 0.0
        %405 = vmatpush1.msra.mxu0 0.0
        %406 = vmatprep.subr.mxu0 0.0
        %407 = vmatpush1.msra.mxu0 0.0
        %408 = vmatprep.subr.mxu0 0.0
        %409 = vmatpush1.msra.mxu0 0.0
        %410 = vmatprep.subr.mxu0 0.0
        %411 = vmatpush1.msra.mxu0 0.0
        %412 = vmatprep.subr.mxu0 0.0
        %413 = vmatpush1.msra.mxu0 0.0
        %414 = vmatprep.subr.mxu0 0.0
        %415 = vmatpush1.msra.mxu0 0.0
        %416 = vmatprep.subr.mxu0 0.0
        %417 = vmatpush1.msra.mxu0 0.0
        %418 = vmatprep.subr.mxu0 0.0
        %419 = vmatpush1.msra.mxu0 0.0
        %420 = vmatprep.subr.mxu0 0.0
        %421 = vmatpush1.msra.mxu0 0.0
        %422 = vmatprep.subr.mxu0 0.0
        %423 = vmatpush1.msra.mxu0 0.0
        %424 = vmatprep.subr.mxu0 0.0
        %425 = vmatpush1.msra.mxu0 0.0
        %426 = vmatprep.subr.mxu0 0.0
        %427 = vmatpush1.msra.mxu0 0.0
        %428 = vmatprep.subr.mxu0 0.0
        %429 = vmatpush1.msra.mxu0 0.0
        %430 = vmatprep.subr.mxu0 0.0
        %431 = vmatpush1.msra.mxu0 0.0
        %432 = vmatprep.subr.mxu0 0.0
        %433 = vmatpush1.msra.mxu0 0.0
        %434 = vmatprep.subr.mxu0 0.0
        %435 = vmatpush1.msra.mxu0 0.0
        %436 = vmatprep.mubr.f32.mxu0 0.0
        %437 = vmatmul.mubr.f32.gmra.mrb[0].mxu0 %v350
        %v438 = vpop.f32.mrb[0].mxu0
        %v439 = vadd.f32 %v371, %v438
        %v440 = vpop.f32.mrb[0].mxu0
        %441 = vdwg.mxu0
        %442 = vst.msk [vmem:[%s173] sm:$0xff] %vm184, %v439
        %s443 = sand.u32 %s75, 1
        %s444 = scalar_lea.sflag [#allocation4], %s443
        %s445 = sand.u32 %s75, 1
        %s446 = smul.addr %s445, 8
        %s447 = scalar_lea.vmem [#allocation7], %s446
        // Predicated region
        $region37: #{tpu_custom_call.1} parent=27 // pred_check
          %p448 = pneg %p85
        $region38: #{tpu_custom_call.1} parent=27 // pred_check_branch
          %450 = sbr.rel (%p448) target = $region40
        $region39: #{tpu_custom_call.1} parent=27 // pred_region
          %s452 = ssub.s32 128, 128
          %453 = vsyncadd %s444, %s452
          %s454 = smul.addr %s20, 128
          %s455 = scalar_lea.hbm %s2, %s454
          %s457 = sshll.u32 %s447, 4
          %s458 = int_to_ptr.vmem [resolvable:$true] %s457
          %460 = dma.vmem_to_hbm [thread:$0]  %s458, 128, %s455, %s444
        $region40: #{tpu_custom_call.1} parent=27 // pred_fallthru
          _
      $region28: #{tpu_custom_call.1} parent=5 // pred_fallthru
        _
      %p461 = scmp.le.s32.totalorder 2, %s15
      // Predicated region
      $region41: #{tpu_custom_call.1} parent=5 // pred_check
        %p462 = pneg %p461
      $region42: #{tpu_custom_call.1} parent=5 // pred_check_branch
        %464 = sbr.rel (%p462) target = $region44
      $region43: #{tpu_custom_call.1} parent=5 // pred_region
        %s465 = ssub.s32 %s15, 2
        // Predicated region
        $region45: #{tpu_custom_call.1} parent=43 // pred_check
          %p466 = pneg %p91
        $region46: #{tpu_custom_call.1} parent=43 // pred_check_branch
          %468 = sbr.rel (%p466) target = $region48
        $region47: #{tpu_custom_call.1} parent=43 // pred_region
          %s469 = sand.u32 %s76, 1
          %s470 = scalar_lea.sflag [#allocation4], %s469
          %s471 = sand.u32 %s76, 1
          %s472 = smul.addr %s471, 8
          %s473 = scalar_lea.vmem [#allocation7], %s472
          %474 = dma.done %s470, 128
        $region48: #{tpu_custom_call.1} parent=43 // pred_fallthru
          _
      $region44: #{tpu_custom_call.1} parent=5 // pred_fallthru
        _
    $region6: #{tpu_custom_call.1} parent=1 // loop_footer
      %s19 = sadd.s32 1, %s15
    $region7: #{tpu_custom_call.1} parent=1 // loop_footer_branch
      %14 = sbr.rel target = $region3
    $region8: #{tpu_custom_call.1} parent=1 // loop_exit
      _
    %475 = vsyncpa [#allocation3], 1
    %s476 = scalar_lea.sflag [#allocation3], 1
    %477 = vsyncpa %s476, 1
    %478 = vsyncpa [#allocation6], 1
    %479 = vsyncpa [#allocation4], 1
    %s480 = scalar_lea.sflag [#allocation4], 1
    %481 = vsyncpa %s480, 1

</llo_original>
